<compile_context>
chip_gen: v5e
topology: v5e:2x2
jax: 0.10.0
libtpu: 0.0.40
codegen_flags: <defaults>
</compile_context>

<pallas_src>
import jax
import jax.numpy as jnp
from jax.experimental import pallas as pl
from jax.experimental.pallas import tpu as pltpu


def _round_up(x, m):
    return (x + m - 1) // m * m


# ----------------------------- Pallas kernel ------------------------------- #
def _mlp_kernel(x_ref,
                w1_ref, b1_ref,
                w2_ref, b2_ref,
                w3_ref, b3_ref,
                w4_ref, b4_ref,
                out_ref):
    """Fused 3-hidden-layer MLP forward for one batch tile.

    BN (eval mode) + layer bias are pre-folded into W'/b', so each hidden
    layer is h = relu(h @ W' + b') and the output layer is y = h @ W4 + b4.
    Matmul operands use the weights' dtype (bf16 or f32) with f32
    accumulation; bias-add / ReLU stay in f32 (v5e has no bf16 VPU).
    """
    # Cast x to the MXU operand dtype in-kernel (no separate XLA convert op).
    h = jnp.dot(x_ref[...].astype(w1_ref.dtype), w1_ref[...],
                preferred_element_type=jnp.float32) + b1_ref[...]
    h = jnp.maximum(h, 0.0)

    h = jnp.dot(h.astype(w2_ref.dtype), w2_ref[...],
                preferred_element_type=jnp.float32) + b2_ref[...]
    h = jnp.maximum(h, 0.0)

    h = jnp.dot(h.astype(w3_ref.dtype), w3_ref[...],
                preferred_element_type=jnp.float32) + b3_ref[...]
    h = jnp.maximum(h, 0.0)

    y = jnp.dot(h.astype(w4_ref.dtype), w4_ref[...],
                preferred_element_type=jnp.float32) + b4_ref[...]
    out_ref[...] = y.astype(out_ref.dtype)


# ------------------- One-time parameter preparation ------------------------ #
def prepare_params(params, *, use_bf16=True, eps=1e-5):
    """Fold eval-mode BatchNorm + bias into the Linears, pad narrow dims to
    128 lanes, and cast matmul operands to bf16 (optional).

    Call ONCE and reuse the result for every forward call — this removes all
    per-call weight-side XLA ops (the dominant cost at this problem size).
    """
    #   W' = W * scale (column-wise),  b' = b * scale + shift
    def fold(w, b, gamma, beta, mean, var):
        scale = gamma * jax.lax.rsqrt(var + eps)
        shift = beta - mean * scale
        return w * scale[None, :], b * scale + shift

    w1, b1 = fold(params["w1"], params["b1"],
                  params["g1"], params["be1"], params["m1"], params["v1"])
    w2, b2 = fold(params["w2"], params["b2"],
                  params["g2"], params["be2"], params["m2"], params["v2"])
    w3, b3 = fold(params["w3"], params["b3"],
                  params["g3"], params["be3"], params["m3"], params["v3"])
    w4, b4 = params["w4"], params["b4"]

    # Lane-dense padding: layer-3 width and class count up to 128.
    h3 = w3.shape[1]
    num_classes = w4.shape[1]
    h3p = _round_up(h3, 128)
    ncp = _round_up(num_classes, 128)
    if h3p != h3:
        w3 = jnp.pad(w3, ((0, 0), (0, h3p - h3)))
        b3 = jnp.pad(b3, (0, h3p - h3))
        w4 = jnp.pad(w4, ((0, h3p - h3), (0, 0)))   # zero rows: padded acts contribute 0
    if ncp != num_classes:
        w4 = jnp.pad(w4, ((0, 0), (0, ncp - num_classes)))
        b4 = jnp.pad(b4, (0, ncp - num_classes))

    # dtype prep: bf16 matmul operands (MXU fast path), f32 biases as [1, N].
    mx_dtype = jnp.bfloat16 if use_bf16 else jnp.float32
    w1, w2, w3, w4 = (w.astype(mx_dtype) for w in (w1, w2, w3, w4))
    b1, b2, b3, b4 = (b.astype(jnp.float32)[None, :] for b in (b1, b2, b3, b4))

    return {"w1": w1, "b1": b1, "w2": w2, "b2": b2,
            "w3": w3, "b3": b3, "w4": w4, "b4": b4}


# ------------------------------ Forward ------------------------------------ #
def enhanced_mlp_forward(x, prepared, *, num_classes, batch_tile=256):
    """Fused MLP forward. `prepared` comes from prepare_params().

    x: [B, input_size] float32 (cast to the matmul dtype inside the kernel).
    """
    B, in_size = x.shape
    w1, b1 = prepared["w1"], prepared["b1"]
    w2, b2 = prepared["w2"], prepared["b2"]
    w3, b3 = prepared["w3"], prepared["b3"]
    w4, b4 = prepared["w4"], prepared["b4"]
    h1, h2, h3p, ncp = w1.shape[1], w2.shape[1], w3.shape[1], w4.shape[1]

    # Batch tiling: default 256-row tiles -> grid collapses to 1 on single-TC
    # v5e/v6e for B <= 256; for B >= 512 the "parallel" batch axis shards
    # 256-row tiles across v7x's two TensorCores. Round to 16 so small bf16
    # batches avoid packed-sublane relayout.
    tile = _round_up(min(batch_tile, B), 16)
    Bp = _round_up(B, tile)
    x_in = x if Bp == B else jnp.pad(x, ((0, Bp - B), (0, 0)))
    grid = (Bp // tile,)

    # x / out are tiled along batch; all parameters are replicated per step.
    def rep(arr):
        return pl.BlockSpec(arr.shape, lambda i: (0, 0))

    in_specs = [
        pl.BlockSpec((tile, in_size), lambda i: (i, 0)),   # x
        rep(w1), rep(b1),
        rep(w2), rep(b2),
        rep(w3), rep(b3),
        rep(w4), rep(b4),
    ]
    out_specs = pl.BlockSpec((tile, ncp), lambda i: (i, 0))

    flops = 2 * Bp * (in_size * h1 + h1 * h2 + h2 * h3p + h3p * ncp)
    bytes_accessed = (
        x_in.size * x_in.dtype.itemsize
        + sum(a.size * a.dtype.itemsize
              for a in (w1, b1, w2, b2, w3, b3, w4, b4))
        + Bp * ncp * 4)

    fn = pl.pallas_call(
        _mlp_kernel,
        out_shape=jax.ShapeDtypeStruct((Bp, ncp), jnp.float32),
        grid_spec=pltpu.PrefetchScalarGridSpec(
            num_scalar_prefetch=0,
            grid=grid,
            in_specs=in_specs,
            out_specs=out_specs,
        ),
        compiler_params=pltpu.CompilerParams(
            dimension_semantics=("parallel",)),
        cost_estimate=pl.CostEstimate(
            flops=flops, transcendentals=0, bytes_accessed=bytes_accessed),
    )
    out = fn(x_in, w1, b1, w2, b2, w3, b3, w4, b4)
    # Strip batch + class padding.
    return out[:B, :num_classes]


# ---------------------- Deterministic parameter init ----------------------- #
def init_params(key, input_size, hidden_layers, num_classes):
    sizes = [input_size] + list(hidden_layers) + [num_classes]
    params = {}
    keys = jax.random.split(key, 2 * len(hidden_layers) + 2)
    k_idx = 0
    for li in range(len(hidden_layers) + 1):
        fan_in, fan_out = sizes[li], sizes[li + 1]
        bound = 1.0 / jnp.sqrt(fan_in)
        w = jax.random.uniform(keys[k_idx], (fan_in, fan_out),
                               minval=-bound, maxval=bound, dtype=jnp.float32)
        k_idx += 1
        b = jax.random.uniform(keys[k_idx], (fan_out,),
                               minval=-bound, maxval=bound, dtype=jnp.float32)
        k_idx += 1
        params[f"w{li + 1}"] = w
        params[f"b{li + 1}"] = b
    # BatchNorm parameters (eval-mode running stats), perturbed slightly so
    # the BN math is actually exercised.
    for li, h in enumerate(hidden_layers, start=1):
        params[f"g{li}"] = jnp.ones((h,), jnp.float32) * 1.1
        params[f"be{li}"] = jnp.full((h,), 0.05, jnp.float32)
        params[f"m{li}"] = jnp.full((h,), 0.02, jnp.float32)
        params[f"v{li}"] = jnp.ones((h,), jnp.float32) * 0.9
    return params


# ------------------------- Pure-JAX reference ------------------------------ #
def reference_forward(x, params):
    eps = 1e-5
    h = x
    for li in (1, 2, 3):
        h = h @ params[f"w{li}"] + params[f"b{li}"]
        h = (h - params[f"m{li}"]) / jnp.sqrt(params[f"v{li}"] + eps)
        h = h * params[f"g{li}"] + params[f"be{li}"]
        h = jnp.maximum(h, 0.0)
    return h @ params["w4"] + params["b4"]


if __name__ == "__main__":
    input_size = 64
    hidden_layers = [256, 128, 64]
    num_classes = 10
    batch = 256

    key = jax.random.PRNGKey(0)
    kx, kp = jax.random.split(key)
    x = jax.random.normal(kx, (batch, input_size), dtype=jnp.float32)
    params = init_params(kp, input_size, hidden_layers, num_classes)

    ref = reference_forward(x, params)

    fwd = jax.jit(enhanced_mlp_forward,
                  static_argnames=("num_classes", "batch_tile"))

    # One-time weight preparation (BN fold + padding + casts) hoisted out of
    # the per-call path.
    prep_f32 = prepare_params(params, use_bf16=False)
    out_f32 = jax.block_until_ready(
        fwd(x, prep_f32, num_classes=num_classes, batch_tile=256))
    assert out_f32.shape == (batch, num_classes)
    assert jnp.allclose(out_f32, ref, atol=1e-3, rtol=1e-3), "f32 mismatch vs reference"

    # bf16 matmul operands (v6e/v7x MXU fast path), f32 accumulate + elementwise.
    prep_bf16 = prepare_params(params, use_bf16=True)
    out_bf16 = jax.block_until_ready(
        fwd(x, prep_bf16, num_classes=num_classes, batch_tile=256))
    assert out_bf16.shape == (batch, num_classes)
    assert jnp.allclose(out_bf16, ref, atol=6e-2, rtol=6e-2), "bf16 mismatch vs reference"

    print("KERNEL_OK")
</pallas_src>

<mosaic_0001>
module attributes {stable_mosaic.version = 11 : i64} {
  func.func @_mlp_kernel(%arg0: i32, %arg1: memref<256x64xf32, #tpu.memory_space<vmem>>, %arg2: memref<64x256xf32, #tpu.memory_space<vmem>>, %arg3: memref<1x256xf32, #tpu.memory_space<vmem>>, %arg4: memref<256x128xf32, #tpu.memory_space<vmem>>, %arg5: memref<1x128xf32, #tpu.memory_space<vmem>>, %arg6: memref<128x128xf32, #tpu.memory_space<vmem>>, %arg7: memref<1x128xf32, #tpu.memory_space<vmem>>, %arg8: memref<128x128xf32, #tpu.memory_space<vmem>>, %arg9: memref<1x128xf32, #tpu.memory_space<vmem>>, %arg10: memref<256x128xf32, #tpu.memory_space<vmem>>) attributes {dimension_semantics = [#tpu.dimension_semantics<parallel>], iteration_bounds = array<i64: 1>, scalar_prefetch = 0 : i64, scratch_operands = 0 : i64, tpu.core_type = #tpu.core_type<tc>, window_params = [{transform_indices = @transform_0, window_bounds = array<i64: 256, 64>}, {pipeline_mode = #tpu.pipeline_mode<synchronous>, transform_indices = @transform_1, window_bounds = array<i64: 64, 256>}, {pipeline_mode = #tpu.pipeline_mode<synchronous>, transform_indices = @transform_2, window_bounds = array<i64: 1, 256>}, {pipeline_mode = #tpu.pipeline_mode<synchronous>, transform_indices = @transform_3, window_bounds = array<i64: 256, 128>}, {pipeline_mode = #tpu.pipeline_mode<synchronous>, transform_indices = @transform_4, window_bounds = array<i64: 1, 128>}, {pipeline_mode = #tpu.pipeline_mode<synchronous>, transform_indices = @transform_5, window_bounds = array<i64: 128, 128>}, {pipeline_mode = #tpu.pipeline_mode<synchronous>, transform_indices = @transform_6, window_bounds = array<i64: 1, 128>}, {pipeline_mode = #tpu.pipeline_mode<synchronous>, transform_indices = @transform_7, window_bounds = array<i64: 128, 128>}, {pipeline_mode = #tpu.pipeline_mode<synchronous>, transform_indices = @transform_8, window_bounds = array<i64: 1, 128>}, {transform_indices = @transform_9, window_bounds = array<i64: 256, 128>}]} {
    %c0 = arith.constant 0 : index
    %c0_0 = arith.constant 0 : index
    %0 = vector.load %arg1[%c0, %c0_0] : memref<256x64xf32, #tpu.memory_space<vmem>>, vector<256x64xf32>
    %c0_1 = arith.constant 0 : index
    %c0_2 = arith.constant 0 : index
    %1 = vector.load %arg2[%c0_1, %c0_2] : memref<64x256xf32, #tpu.memory_space<vmem>>, vector<64x256xf32>
    %cst = arith.constant dense<0.000000e+00> : vector<256x256xf32>
    %2 = tpu.matmul %0, %1, %cst {dimension_numbers = #tpu.dot_dimension_numbers<[1], [0], [0], [1], [0, 0, 1, 1], [], []>} : vector<256x64xf32>, vector<64x256xf32>, vector<256x256xf32> -> vector<256x256xf32>
    %c0_3 = arith.constant 0 : index
    %c0_4 = arith.constant 0 : index
    %3 = vector.load %arg3[%c0_3, %c0_4] : memref<1x256xf32, #tpu.memory_space<vmem>>, vector<1x256xf32>
    %4 = vector.broadcast %3 : vector<1x256xf32> to vector<256x256xf32>
    %5 = arith.addf %2, %4 : vector<256x256xf32>
    %cst_5 = arith.constant 0.000000e+00 : f32
    %6 = vector.broadcast %cst_5 : f32 to vector<256x256xf32>
    %7 = arith.maximumf %5, %6 : vector<256x256xf32>
    %c0_6 = arith.constant 0 : index
    %c0_7 = arith.constant 0 : index
    %8 = vector.load %arg4[%c0_6, %c0_7] : memref<256x128xf32, #tpu.memory_space<vmem>>, vector<256x128xf32>
    %cst_8 = arith.constant dense<0.000000e+00> : vector<256x128xf32>
    %9 = tpu.matmul %7, %8, %cst_8 {dimension_numbers = #tpu.dot_dimension_numbers<[1], [0], [0], [1], [0, 0, 1, 1], [], []>} : vector<256x256xf32>, vector<256x128xf32>, vector<256x128xf32> -> vector<256x128xf32>
    %c0_9 = arith.constant 0 : index
    %c0_10 = arith.constant 0 : index
    %10 = vector.load %arg5[%c0_9, %c0_10] : memref<1x128xf32, #tpu.memory_space<vmem>>, vector<1x128xf32>
    %11 = vector.broadcast %10 : vector<1x128xf32> to vector<256x128xf32>
    %12 = arith.addf %9, %11 : vector<256x128xf32>
    %cst_11 = arith.constant 0.000000e+00 : f32
    %13 = vector.broadcast %cst_11 : f32 to vector<256x128xf32>
    %14 = arith.maximumf %12, %13 : vector<256x128xf32>
    %c0_12 = arith.constant 0 : index
    %c0_13 = arith.constant 0 : index
    %15 = vector.load %arg6[%c0_12, %c0_13] : memref<128x128xf32, #tpu.memory_space<vmem>>, vector<128x128xf32>
    %cst_14 = arith.constant dense<0.000000e+00> : vector<256x128xf32>
    %16 = tpu.matmul %14, %15, %cst_14 {dimension_numbers = #tpu.dot_dimension_numbers<[1], [0], [0], [1], [0, 0, 1, 1], [], []>} : vector<256x128xf32>, vector<128x128xf32>, vector<256x128xf32> -> vector<256x128xf32>
    %c0_15 = arith.constant 0 : index
    %c0_16 = arith.constant 0 : index
    %17 = vector.load %arg7[%c0_15, %c0_16] : memref<1x128xf32, #tpu.memory_space<vmem>>, vector<1x128xf32>
    %18 = vector.broadcast %17 : vector<1x128xf32> to vector<256x128xf32>
    %19 = arith.addf %16, %18 : vector<256x128xf32>
    %cst_17 = arith.constant 0.000000e+00 : f32
    %20 = vector.broadcast %cst_17 : f32 to vector<256x128xf32>
    %21 = arith.maximumf %19, %20 : vector<256x128xf32>
    %c0_18 = arith.constant 0 : index
    %c0_19 = arith.constant 0 : index
    %22 = vector.load %arg8[%c0_18, %c0_19] : memref<128x128xf32, #tpu.memory_space<vmem>>, vector<128x128xf32>
    %cst_20 = arith.constant dense<0.000000e+00> : vector<256x128xf32>
    %23 = tpu.matmul %21, %22, %cst_20 {dimension_numbers = #tpu.dot_dimension_numbers<[1], [0], [0], [1], [0, 0, 1, 1], [], []>} : vector<256x128xf32>, vector<128x128xf32>, vector<256x128xf32> -> vector<256x128xf32>
    %c0_21 = arith.constant 0 : index
    %c0_22 = arith.constant 0 : index
    %24 = vector.load %arg9[%c0_21, %c0_22] : memref<1x128xf32, #tpu.memory_space<vmem>>, vector<1x128xf32>
    %25 = vector.broadcast %24 : vector<1x128xf32> to vector<256x128xf32>
    %26 = arith.addf %23, %25 : vector<256x128xf32>
    %c0_23 = arith.constant 0 : index
    %c0_24 = arith.constant 0 : index
    %27 = vector.load %arg10[%c0_23, %c0_24] : memref<256x128xf32, #tpu.memory_space<vmem>>, vector<256x128xf32>
    tpu.vector_store %arg10[%c0_23, %c0_24], %26 {strides = array<i32>} : memref<256x128xf32, #tpu.memory_space<vmem>>, vector<256x128xf32>,
    return
  }
  func.func @transform_0(%arg0: i32) -> (i32, i32) {
    %c0_i32 = arith.constant 0 : i32
    %c0_i32_0 = arith.constant 0 : i32
    return %arg0, %c0_i32 : i32, i32
  }
  func.func @transform_1(%arg0: i32) -> (i32, i32) {
    %c0_i32 = arith.constant 0 : i32
    %c0_i32_0 = arith.constant 0 : i32
    %c0_i32_1 = arith.constant 0 : i32
    return %c0_i32, %c0_i32_0 : i32, i32
  }
  func.func @transform_2(%arg0: i32) -> (i32, i32) {
    %c0_i32 = arith.constant 0 : i32
    %c0_i32_0 = arith.constant 0 : i32
    %c0_i32_1 = arith.constant 0 : i32
    return %c0_i32, %c0_i32_0 : i32, i32
  }
  func.func @transform_3(%arg0: i32) -> (i32, i32) {
    %c0_i32 = arith.constant 0 : i32
    %c0_i32_0 = arith.constant 0 : i32
    %c0_i32_1 = arith.constant 0 : i32
    return %c0_i32, %c0_i32_0 : i32, i32
  }
  func.func @transform_4(%arg0: i32) -> (i32, i32) {
    %c0_i32 = arith.constant 0 : i32
    %c0_i32_0 = arith.constant 0 : i32
    %c0_i32_1 = arith.constant 0 : i32
    return %c0_i32, %c0_i32_0 : i32, i32
  }
  func.func @transform_5(%arg0: i32) -> (i32, i32) {
    %c0_i32 = arith.constant 0 : i32
    %c0_i32_0 = arith.constant 0 : i32
    %c0_i32_1 = arith.constant 0 : i32
    return %c0_i32, %c0_i32_0 : i32, i32
  }
  func.func @transform_6(%arg0: i32) -> (i32, i32) {
    %c0_i32 = arith.constant 0 : i32
    %c0_i32_0 = arith.constant 0 : i32
    %c0_i32_1 = arith.constant 0 : i32
    return %c0_i32, %c0_i32_0 : i32, i32
  }
  func.func @transform_7(%arg0: i32) -> (i32, i32) {
    %c0_i32 = arith.constant 0 : i32
    %c0_i32_0 = arith.constant 0 : i32
    %c0_i32_1 = arith.constant 0 : i32
    return %c0_i32, %c0_i32_0 : i32, i32
  }
  func.func @transform_8(%arg0: i32) -> (i32, i32) {
    %c0_i32 = arith.constant 0 : i32
    %c0_i32_0 = arith.constant 0 : i32
    %c0_i32_1 = arith.constant 0 : i32
    return %c0_i32, %c0_i32_0 : i32, i32
  }
  func.func @transform_9(%arg0: i32) -> (i32, i32) {
    %c0_i32 = arith.constant 0 : i32
    %c0_i32_0 = arith.constant 0 : i32
    return %arg0, %c0_i32 : i32, i32
  }
}

</mosaic_0001>

<llo_original>
// kernel: enhanced_mlp_forward.1
$region0: #{enhanced_mlp_forward.1}
  #allocation0 [shape = 'u32[]', space=smem, size = 0x4, offset = 0x4, fixed_abs, tag = 'smem constant byte address 0x4 - core index']
  #allocation1 [shape = 'u32[72,128]{1,0:T(1,128)}', space=vmem, size = 0x9000, scoped, tag = 'internal scratch']
  %s0 = inlined_call_operand.vmem [shape: f32[256,64], index: 0, kind: input, shape index: {}]
  %s1 = inlined_call_operand.vmem [shape: f32[64,256], index: 1, kind: input, shape index: {}]
  %s2 = inlined_call_operand.vmem [shape: f32[1,256], index: 2, kind: input, shape index: {}]
  %s3 = inlined_call_operand.vmem [shape: f32[256,128], index: 3, kind: input, shape index: {}]
  %s4 = inlined_call_operand.vmem [shape: f32[1,128], index: 4, kind: input, shape index: {}]
  %s5 = inlined_call_operand.hbm [shape: f32[128,128], index: 5, kind: input, shape index: {}]
  %s6 = inlined_call_operand.vmem [shape: f32[1,128], index: 6, kind: input, shape index: {}]
  %s7 = inlined_call_operand.hbm [shape: f32[128,128], index: 7, kind: input, shape index: {}]
  %s8 = inlined_call_operand.vmem [shape: f32[1,128], index: 8, kind: input, shape index: {}]
  %s9 = inlined_call_operand.vmem [shape: f32[256,128], index: 9, kind: output, shape index: {}]
  %s10 = sld [smem:[#allocation0]]
  $region54: #{enhanced_mlp_forward.1} parent=0
    _
  %s12 = ssub.s32 1, %s10
  %s13 = scalar_select 0, %s12, %s10
  $region1: #{enhanced_mlp_forward.1} parent=0
    #allocation2 [shape = 'u8[65536]{0}', space=vmem, size = 0x10000, scoped, tag = 'input window, operand 5, single buffered']
    #allocation3 [shape = 's32[1]{0}', space=sflag, size = 0x4, scoped, tag = 'scoped memory for enhanced_mlp_forward.1']
    #allocation4 [shape = 'u8[65536]{0}', space=vmem, size = 0x10000, scoped, tag = 'input window, operand 7, single buffered']
    #allocation5 [shape = 's32[1]{0}', space=sflag, size = 0x4, scoped, tag = 'scoped memory for enhanced_mlp_forward.1']
    %14 = vsyncpa [#allocation3], 0
    %15 = vsyncpa [#allocation5], 0
    // Predicated region
    $region2: #{enhanced_mlp_forward.1} parent=1 // pred_check
      _
    $region3: #{enhanced_mlp_forward.1} parent=1 // pred_check_branch
      %17 = sbr.rel (0) target = $region5
    $region4: #{enhanced_mlp_forward.1} parent=1 // pred_region
      _
    $region5: #{enhanced_mlp_forward.1} parent=1 // pred_fallthru
      _
    // Predicated region
    $region6: #{enhanced_mlp_forward.1} parent=1 // pred_check
      _
    $region7: #{enhanced_mlp_forward.1} parent=1 // pred_check_branch
      %19 = sbr.rel (0) target = $region9
    $region8: #{enhanced_mlp_forward.1} parent=1 // pred_region
      _
    $region9: #{enhanced_mlp_forward.1} parent=1 // pred_fallthru
      _
    // Predicated region
    $region10: #{enhanced_mlp_forward.1} parent=1 // pred_check
      _
    $region11: #{enhanced_mlp_forward.1} parent=1 // pred_check_branch
      %21 = sbr.rel (0) target = $region13
    $region12: #{enhanced_mlp_forward.1} parent=1 // pred_region
      _
    $region13: #{enhanced_mlp_forward.1} parent=1 // pred_fallthru
      _
    // Predicated region
    $region14: #{enhanced_mlp_forward.1} parent=1 // pred_check
      _
    $region15: #{enhanced_mlp_forward.1} parent=1 // pred_check_branch
      %23 = sbr.rel (0) target = $region17
    $region16: #{enhanced_mlp_forward.1} parent=1 // pred_region
      _
    $region17: #{enhanced_mlp_forward.1} parent=1 // pred_fallthru
      _
    // Predicated region
    $region18: #{enhanced_mlp_forward.1} parent=1 // pred_check
      _
    $region19: #{enhanced_mlp_forward.1} parent=1 // pred_check_branch
      %25 = sbr.rel (0) target = $region21
    $region20: #{enhanced_mlp_forward.1} parent=1 // pred_region
      _
    $region21: #{enhanced_mlp_forward.1} parent=1 // pred_fallthru
      _
    // Predicated region
    $region22: #{enhanced_mlp_forward.1} parent=1 // pred_check
      _
    $region23: #{enhanced_mlp_forward.1} parent=1 // pred_check_branch
      %27 = sbr.rel (0) target = $region25
    $region24: #{enhanced_mlp_forward.1} parent=1 // pred_region
      %29 = vsyncadd [#allocation3], 0
      %s30 = sshll.u32 %s5, 4
      %s31 = int_to_ptr.hbm [resolvable:$true] %s30
      %s32 = sshll.u32 [#allocation2], 4
      %s33 = int_to_ptr.vmem [resolvable:$true] %s32
      %38 = dma.hbm_to_vmem [thread:$0]  %s31, 2048, %s33, [#allocation3], 128, 128, 8
    $region25: #{enhanced_mlp_forward.1} parent=1 // pred_fallthru
      _
    // Predicated region
    $region26: #{enhanced_mlp_forward.1} parent=1 // pred_check
      _
    $region27: #{enhanced_mlp_forward.1} parent=1 // pred_check_branch
      %40 = sbr.rel (0) target = $region29
    $region28: #{enhanced_mlp_forward.1} parent=1 // pred_region
      _
    $region29: #{enhanced_mlp_forward.1} parent=1 // pred_fallthru
      _
    // Predicated region
    $region30: #{enhanced_mlp_forward.1} parent=1 // pred_check
      _
    $region31: #{enhanced_mlp_forward.1} parent=1 // pred_check_branch
      %42 = sbr.rel (0) target = $region33
    $region32: #{enhanced_mlp_forward.1} parent=1 // pred_region
      %44 = vsyncadd [#allocation5], 0
      %s45 = sshll.u32 %s7, 4
      %s46 = int_to_ptr.hbm [resolvable:$true] %s45
      %s47 = sshll.u32 [#allocation4], 4
      %s48 = int_to_ptr.vmem [resolvable:$true] %s47
      %53 = dma.hbm_to_vmem [thread:$0]  %s46, 2048, %s48, [#allocation5], 128, 128, 8
    $region33: #{enhanced_mlp_forward.1} parent=1 // pred_fallthru
      _
    // Predicated region
    $region34: #{enhanced_mlp_forward.1} parent=1 // pred_check
      _
    $region35: #{enhanced_mlp_forward.1} parent=1 // pred_check_branch
      %55 = sbr.rel (0) target = $region37
    $region36: #{enhanced_mlp_forward.1} parent=1 // pred_region
      _
    $region37: #{enhanced_mlp_forward.1} parent=1 // pred_fallthru
      _
    // Predicated region
    $region38: #{enhanced_mlp_forward.1} parent=1 // pred_check
      _
    $region39: #{enhanced_mlp_forward.1} parent=1 // pred_check_branch
      %57 = sbr.rel (0) target = $region41
    $region40: #{enhanced_mlp_forward.1} parent=1 // pred_region
      %59 = dma.done [#allocation3], 2048
    $region41: #{enhanced_mlp_forward.1} parent=1 // pred_fallthru
      _
    // Predicated region
    $region42: #{enhanced_mlp_forward.1} parent=1 // pred_check
      _
    $region43: #{enhanced_mlp_forward.1} parent=1 // pred_check_branch
      %61 = sbr.rel (0) target = $region45
    $region44: #{enhanced_mlp_forward.1} parent=1 // pred_region
      %63 = dma.done [#allocation5], 2048
    $region45: #{enhanced_mlp_forward.1} parent=1 // pred_fallthru
      _
    %v64 = vld [vmem:[%s0] sm:$0xff]
    %v65 = vld [vmem:[%s0 + $0x8] sm:$0xff]
    %v66 = vld [vmem:[%s0 + $0x10] sm:$0xff]
    %v67 = vld [vmem:[%s0 + $0x18] sm:$0xff]
    %v68 = vld [vmem:[%s0 + $0x20] sm:$0xff]
    %v69 = vld [vmem:[%s0 + $0x28] sm:$0xff]
    %v70 = vld [vmem:[%s0 + $0x30] sm:$0xff]
    %v71 = vld [vmem:[%s0 + $0x38] sm:$0xff]
    %v72 = vld [vmem:[%s0 + $0x40] sm:$0xff]
    %v73 = vld [vmem:[%s0 + $0x48] sm:$0xff]
    %v74 = vld [vmem:[%s0 + $0x50] sm:$0xff]
    %v75 = vld [vmem:[%s0 + $0x58] sm:$0xff]
    %v76 = vld [vmem:[%s0 + $0x60] sm:$0xff]
    %v77 = vld [vmem:[%s0 + $0x68] sm:$0xff]
    %v78 = vld [vmem:[%s0 + $0x70] sm:$0xff]
    %v79 = vld [vmem:[%s0 + $0x78] sm:$0xff]
    %v80 = vld [vmem:[%s0 + $0x80] sm:$0xff]
    %v81 = vld [vmem:[%s0 + $0x88] sm:$0xff]
    %v82 = vld [vmem:[%s0 + $0x90] sm:$0xff]
    %v83 = vld [vmem:[%s0 + $0x98] sm:$0xff]
    %v84 = vld [vmem:[%s0 + $0xa0] sm:$0xff]
    %v85 = vld [vmem:[%s0 + $0xa8] sm:$0xff]
    %v86 = vld [vmem:[%s0 + $0xb0] sm:$0xff]
    %v87 = vld [vmem:[%s0 + $0xb8] sm:$0xff]
    %v88 = vld [vmem:[%s0 + $0xc0] sm:$0xff]
    %v89 = vld [vmem:[%s0 + $0xc8] sm:$0xff]
    %v90 = vld [vmem:[%s0 + $0xd0] sm:$0xff]
    %v91 = vld [vmem:[%s0 + $0xd8] sm:$0xff]
    %v92 = vld [vmem:[%s0 + $0xe0] sm:$0xff]
    %v93 = vld [vmem:[%s0 + $0xe8] sm:$0xff]
    %v94 = vld [vmem:[%s0 + $0xf0] sm:$0xff]
    %v95 = vld [vmem:[%s0 + $0xf8] sm:$0xff]
    %v96 = vld [vmem:[%s1] sm:$0xff]
    %v97 = vld [vmem:[%s1 + $0x8] sm:$0xff]
    %v98 = vld [vmem:[%s1 + $0x10] sm:$0xff]
    %v99 = vld [vmem:[%s1 + $0x18] sm:$0xff]
    %v100 = vld [vmem:[%s1 + $0x20] sm:$0xff]
    %v101 = vld [vmem:[%s1 + $0x28] sm:$0xff]
    %v102 = vld [vmem:[%s1 + $0x30] sm:$0xff]
    %v103 = vld [vmem:[%s1 + $0x38] sm:$0xff]
    %v104 = vld [vmem:[%s1 + $0x40] sm:$0xff]
    %v105 = vld [vmem:[%s1 + $0x48] sm:$0xff]
    %v106 = vld [vmem:[%s1 + $0x50] sm:$0xff]
    %v107 = vld [vmem:[%s1 + $0x58] sm:$0xff]
    %v108 = vld [vmem:[%s1 + $0x60] sm:$0xff]
    %v109 = vld [vmem:[%s1 + $0x68] sm:$0xff]
    %v110 = vld [vmem:[%s1 + $0x70] sm:$0xff]
    %v111 = vld [vmem:[%s1 + $0x78] sm:$0xff]
    %v112 = vld [vmem:[%s2] sm:$0x3]
    %v114 = vperm.slane %v112, 0
    %v115 = vperm.slane %v112, 1
    %vm118 = vcmask 523264
    %v120 = vsel %vm118, %v64, 0
    %v123 = vsel %vm118, %v65, 0
    %v126 = vsel %vm118, %v66, 0
    %v129 = vsel %vm118, %v67, 0
    %v132 = vsel %vm118, %v68, 0
    %v135 = vsel %vm118, %v69, 0
    %v138 = vsel %vm118, %v70, 0
    %v141 = vsel %vm118, %v71, 0
    %v144 = vsel %vm118, %v72, 0
    %v147 = vsel %vm118, %v73, 0
    %v150 = vsel %vm118, %v74, 0
    %v153 = vsel %vm118, %v75, 0
    %v156 = vsel %vm118, %v76, 0
    %v159 = vsel %vm118, %v77, 0
    %v162 = vsel %vm118, %v78, 0
    %v165 = vsel %vm118, %v79, 0
    %v168 = vsel %vm118, %v80, 0
    %v171 = vsel %vm118, %v81, 0
    %v174 = vsel %vm118, %v82, 0
    %v177 = vsel %vm118, %v83, 0
    %v180 = vsel %vm118, %v84, 0
    %v183 = vsel %vm118, %v85, 0
    %v186 = vsel %vm118, %v86, 0
    %v189 = vsel %vm118, %v87, 0
    %v192 = vsel %vm118, %v88, 0
    %v195 = vsel %vm118, %v89, 0
    %v198 = vsel %vm118, %v90, 0
    %v201 = vsel %vm118, %v91, 0
    %v204 = vsel %vm118, %v92, 0
    %v207 = vsel %vm118, %v93, 0
    %v210 = vsel %vm118, %v94, 0
    %v213 = vsel %vm118, %v95, 0
    %215 = vmatpush.msra.mxu0 0.0
    %216 = vmatpush.msra.mxu0 0.0
    %217 = vmatpush.msra.mxu0 0.0
    %218 = vmatpush.msra.mxu0 0.0
    %219 = vmatpush.msra.mxu0 0.0
    %220 = vmatpush.msra.mxu0 0.0
    %221 = vmatpush.msra.mxu0 0.0
    %222 = vmatpush.msra.mxu0 0.0
    %223 = vmatpush.msra.mxu0 %v110
    %224 = vmatpush.msra.mxu0 %v108
    %225 = vmatpush.msra.mxu0 %v106
    %226 = vmatpush.msra.mxu0 %v104
    %227 = vmatpush.msra.mxu0 %v102
    %228 = vmatpush.msra.mxu0 %v100
    %229 = vmatpush.msra.mxu0 %v98
    %230 = vmatpush.msra.mxu0 %v96
    %231 = vmatmul.f32.gmra.mxu0 %v120
    %v232 = vpop.f32.mrf.mxu0
    %v233 = vadd.f32 %v114, %v232
    %234 = vmatmul.f32.gmra.mxu0 %v123
    %v235 = vpop.f32.mrf.mxu0
    %v236 = vadd.f32 %v114, %v235
    %237 = vmatmul.f32.gmra.mxu0 %v126
    %v238 = vpop.f32.mrf.mxu0
    %v239 = vadd.f32 %v114, %v238
    %240 = vmatmul.f32.gmra.mxu0 %v129
    %v241 = vpop.f32.mrf.mxu0
    %v242 = vadd.f32 %v114, %v241
    %243 = vmatmul.f32.gmra.mxu0 %v132
    %v244 = vpop.f32.mrf.mxu0
    %v245 = vadd.f32 %v114, %v244
    %246 = vmatmul.f32.gmra.mxu0 %v135
    %v247 = vpop.f32.mrf.mxu0
    %v248 = vadd.f32 %v114, %v247
    %249 = vmatmul.f32.gmra.mxu0 %v138
    %v250 = vpop.f32.mrf.mxu0
    %v251 = vadd.f32 %v114, %v250
    %252 = vmatmul.f32.gmra.mxu0 %v141
    %v253 = vpop.f32.mrf.mxu0
    %v254 = vadd.f32 %v114, %v253
    %255 = vmatmul.f32.gmra.mxu0 %v144
    %v256 = vpop.f32.mrf.mxu0
    %v257 = vadd.f32 %v114, %v256
    %258 = vmatmul.f32.gmra.mxu0 %v147
    %v259 = vpop.f32.mrf.mxu0
    %v260 = vadd.f32 %v114, %v259
    %261 = vmatmul.f32.gmra.mxu0 %v150
    %v262 = vpop.f32.mrf.mxu0
    %v263 = vadd.f32 %v114, %v262
    %264 = vmatmul.f32.gmra.mxu0 %v153
    %v265 = vpop.f32.mrf.mxu0
    %v266 = vadd.f32 %v114, %v265
    %267 = vmatmul.f32.gmra.mxu0 %v156
    %v268 = vpop.f32.mrf.mxu0
    %v269 = vadd.f32 %v114, %v268
    %270 = vmatmul.f32.gmra.mxu0 %v159
    %v271 = vpop.f32.mrf.mxu0
    %v272 = vadd.f32 %v114, %v271
    %273 = vmatmul.f32.gmra.mxu0 %v162
    %v274 = vpop.f32.mrf.mxu0
    %v275 = vadd.f32 %v114, %v274
    %276 = vmatmul.f32.gmra.mxu0 %v165
    %v277 = vpop.f32.mrf.mxu0
    %v278 = vadd.f32 %v114, %v277
    %279 = vmatmul.f32.gmra.mxu0 %v168
    %v280 = vpop.f32.mrf.mxu0
    %v281 = vadd.f32 %v114, %v280
    %282 = vmatmul.f32.gmra.mxu0 %v171
    %v283 = vpop.f32.mrf.mxu0
    %v284 = vadd.f32 %v114, %v283
    %285 = vmatmul.f32.gmra.mxu0 %v174
    %v286 = vpop.f32.mrf.mxu0
    %v287 = vadd.f32 %v114, %v286
    %288 = vmatmul.f32.gmra.mxu0 %v177
    %v289 = vpop.f32.mrf.mxu0
    %v290 = vadd.f32 %v114, %v289
    %291 = vmatmul.f32.gmra.mxu0 %v180
    %v292 = vpop.f32.mrf.mxu0
    %v293 = vadd.f32 %v114, %v292
    %294 = vmatmul.f32.gmra.mxu0 %v183
    %v295 = vpop.f32.mrf.mxu0
    %v296 = vadd.f32 %v114, %v295
    %297 = vmatmul.f32.gmra.mxu0 %v186
    %v298 = vpop.f32.mrf.mxu0
    %v299 = vadd.f32 %v114, %v298
    %300 = vmatmul.f32.gmra.mxu0 %v189
    %v301 = vpop.f32.mrf.mxu0
    %v302 = vadd.f32 %v114, %v301
    %303 = vmatmul.f32.gmra.mxu0 %v192
    %v304 = vpop.f32.mrf.mxu0
    %v305 = vadd.f32 %v114, %v304
    %306 = vmatmul.f32.gmra.mxu0 %v195
    %v307 = vpop.f32.mrf.mxu0
    %v308 = vadd.f32 %v114, %v307
    %309 = vmatmul.f32.gmra.mxu0 %v198
    %v310 = vpop.f32.mrf.mxu0
    %v311 = vadd.f32 %v114, %v310
    %312 = vmatmul.f32.gmra.mxu0 %v201
    %v313 = vpop.f32.mrf.mxu0
    %v314 = vadd.f32 %v114, %v313
    %315 = vmatmul.f32.gmra.mxu0 %v204
    %v316 = vpop.f32.mrf.mxu0
    %v317 = vadd.f32 %v114, %v316
    %318 = vmatmul.f32.gmra.mxu0 %v207
    %v319 = vpop.f32.mrf.mxu0
    %v320 = vadd.f32 %v114, %v319
    %321 = vmatmul.f32.gmra.mxu0 %v210
    %v322 = vpop.f32.mrf.mxu0
    %v323 = vadd.f32 %v114, %v322
    %324 = vmatmul.f32.gmra.mxu0 %v213
    %v325 = vpop.f32.mrf.mxu0
    %v326 = vadd.f32 %v114, %v325
    %327 = vdwg.mxu0
    %328 = vmatpush.msra.mxu0 0.0
    %329 = vmatpush.msra.mxu0 0.0
    %330 = vmatpush.msra.mxu0 0.0
    %331 = vmatpush.msra.mxu0 0.0
    %332 = vmatpush.msra.mxu0 0.0
    %333 = vmatpush.msra.mxu0 0.0
    %334 = vmatpush.msra.mxu0 0.0
    %335 = vmatpush.msra.mxu0 0.0
    %336 = vmatpush.msra.mxu0 %v111
    %337 = vmatpush.msra.mxu0 %v109
    %338 = vmatpush.msra.mxu0 %v107
    %339 = vmatpush.msra.mxu0 %v105
    %340 = vmatpush.msra.mxu0 %v103
    %341 = vmatpush.msra.mxu0 %v101
    %342 = vmatpush.msra.mxu0 %v99
    %343 = vmatpush.msra.mxu0 %v97
    %344 = vmatmul.f32.gmra.mxu0 %v120
    %v345 = vpop.f32.mrf.mxu0
    %v346 = vadd.f32 %v115, %v345
    %347 = vmatmul.f32.gmra.mxu0 %v123
    %v348 = vpop.f32.mrf.mxu0
    %v349 = vadd.f32 %v115, %v348
    %350 = vmatmul.f32.gmra.mxu0 %v126
    %v351 = vpop.f32.mrf.mxu0
    %v352 = vadd.f32 %v115, %v351
    %353 = vmatmul.f32.gmra.mxu0 %v129
    %v354 = vpop.f32.mrf.mxu0
    %v355 = vadd.f32 %v115, %v354
    %356 = vmatmul.f32.gmra.mxu0 %v132
    %v357 = vpop.f32.mrf.mxu0
    %v358 = vadd.f32 %v115, %v357
    %359 = vmatmul.f32.gmra.mxu0 %v135
    %v360 = vpop.f32.mrf.mxu0
    %v361 = vadd.f32 %v115, %v360
    %362 = vmatmul.f32.gmra.mxu0 %v138
    %v363 = vpop.f32.mrf.mxu0
    %v364 = vadd.f32 %v115, %v363
    %365 = vmatmul.f32.gmra.mxu0 %v141
    %v366 = vpop.f32.mrf.mxu0
    %v367 = vadd.f32 %v115, %v366
    %368 = vmatmul.f32.gmra.mxu0 %v144
    %v369 = vpop.f32.mrf.mxu0
    %v370 = vadd.f32 %v115, %v369
    %371 = vmatmul.f32.gmra.mxu0 %v147
    %v372 = vpop.f32.mrf.mxu0
    %v373 = vadd.f32 %v115, %v372
    %374 = vmatmul.f32.gmra.mxu0 %v150
    %v375 = vpop.f32.mrf.mxu0
    %v376 = vadd.f32 %v115, %v375
    %377 = vmatmul.f32.gmra.mxu0 %v153
    %v378 = vpop.f32.mrf.mxu0
    %v379 = vadd.f32 %v115, %v378
    %380 = vmatmul.f32.gmra.mxu0 %v156
    %v381 = vpop.f32.mrf.mxu0
    %v382 = vadd.f32 %v115, %v381
    %383 = vmatmul.f32.gmra.mxu0 %v159
    %v384 = vpop.f32.mrf.mxu0
    %v385 = vadd.f32 %v115, %v384
    %386 = vmatmul.f32.gmra.mxu0 %v162
    %v387 = vpop.f32.mrf.mxu0
    %v388 = vadd.f32 %v115, %v387
    %389 = vmatmul.f32.gmra.mxu0 %v165
    %v390 = vpop.f32.mrf.mxu0
    %v391 = vadd.f32 %v115, %v390
    %392 = vmatmul.f32.gmra.mxu0 %v168
    %v393 = vpop.f32.mrf.mxu0
    %v394 = vadd.f32 %v115, %v393
    %395 = vmatmul.f32.gmra.mxu0 %v171
    %v396 = vpop.f32.mrf.mxu0
    %v397 = vadd.f32 %v115, %v396
    %398 = vmatmul.f32.gmra.mxu0 %v174
    %v399 = vpop.f32.mrf.mxu0
    %v400 = vadd.f32 %v115, %v399
    %401 = vmatmul.f32.gmra.mxu0 %v177
    %v402 = vpop.f32.mrf.mxu0
    %v403 = vadd.f32 %v115, %v402
    %404 = vmatmul.f32.gmra.mxu0 %v180
    %v405 = vpop.f32.mrf.mxu0
    %v406 = vadd.f32 %v115, %v405
    %407 = vmatmul.f32.gmra.mxu0 %v183
    %v408 = vpop.f32.mrf.mxu0
    %v409 = vadd.f32 %v115, %v408
    %410 = vmatmul.f32.gmra.mxu0 %v186
    %v411 = vpop.f32.mrf.mxu0
    %v412 = vadd.f32 %v115, %v411
    %413 = vmatmul.f32.gmra.mxu0 %v189
    %v414 = vpop.f32.mrf.mxu0
    %v415 = vadd.f32 %v115, %v414
    %416 = vmatmul.f32.gmra.mxu0 %v192
    %v417 = vpop.f32.mrf.mxu0
    %v418 = vadd.f32 %v115, %v417
    %419 = vmatmul.f32.gmra.mxu0 %v195
    %v420 = vpop.f32.mrf.mxu0
    %v421 = vadd.f32 %v115, %v420
    %422 = vmatmul.f32.gmra.mxu0 %v198
    %v423 = vpop.f32.mrf.mxu0
    %v424 = vadd.f32 %v115, %v423
    %425 = vmatmul.f32.gmra.mxu0 %v201
    %v426 = vpop.f32.mrf.mxu0
    %v427 = vadd.f32 %v115, %v426
    %428 = vmatmul.f32.gmra.mxu0 %v204
    %v429 = vpop.f32.mrf.mxu0
    %v430 = vadd.f32 %v115, %v429
    %431 = vmatmul.f32.gmra.mxu0 %v207
    %v432 = vpop.f32.mrf.mxu0
    %v433 = vadd.f32 %v115, %v432
    %434 = vmatmul.f32.gmra.mxu0 %v210
    %v435 = vpop.f32.mrf.mxu0
    %v436 = vadd.f32 %v115, %v435
    %437 = vmatmul.f32.gmra.mxu0 %v213
    %v438 = vpop.f32.mrf.mxu0
    %v439 = vadd.f32 %v115, %v438
    %440 = vdwg.mxu0
    %v441 = vmax.f32 %v233, 0.0
    %v442 = vmax.f32 %v346, 0.0
    %v443 = vmax.f32 %v236, 0.0
    %v444 = vmax.f32 %v349, 0.0
    %v445 = vmax.f32 %v239, 0.0
    %v446 = vmax.f32 %v352, 0.0
    %v447 = vmax.f32 %v242, 0.0
    %v448 = vmax.f32 %v355, 0.0
    %v449 = vmax.f32 %v245, 0.0
    %v450 = vmax.f32 %v358, 0.0
    %v451 = vmax.f32 %v248, 0.0
    %v452 = vmax.f32 %v361, 0.0
    %v453 = vmax.f32 %v251, 0.0
    %v454 = vmax.f32 %v364, 0.0
    %v455 = vmax.f32 %v254, 0.0
    %v456 = vmax.f32 %v367, 0.0
    %v457 = vmax.f32 %v257, 0.0
    %v458 = vmax.f32 %v370, 0.0
    %v459 = vmax.f32 %v260, 0.0
    %v460 = vmax.f32 %v373, 0.0
    %v461 = vmax.f32 %v263, 0.0
    %v462 = vmax.f32 %v376, 0.0
    %v463 = vmax.f32 %v266, 0.0
    %v464 = vmax.f32 %v379, 0.0
    %v465 = vmax.f32 %v269, 0.0
    %v466 = vmax.f32 %v382, 0.0
    %v467 = vmax.f32 %v272, 0.0
    %v468 = vmax.f32 %v385, 0.0
    %v469 = vmax.f32 %v275, 0.0
    %v470 = vmax.f32 %v388, 0.0
    %v471 = vmax.f32 %v278, 0.0
    %v472 = vmax.f32 %v391, 0.0
    %v473 = vmax.f32 %v281, 0.0
    %v474 = vmax.f32 %v394, 0.0
    %v475 = vmax.f32 %v284, 0.0
    %v476 = vmax.f32 %v397, 0.0
    %v477 = vmax.f32 %v287, 0.0
    %v478 = vmax.f32 %v400, 0.0
    %v479 = vmax.f32 %v290, 0.0
    %v480 = vmax.f32 %v403, 0.0
    %v481 = vmax.f32 %v293, 0.0
    %v482 = vmax.f32 %v406, 0.0
    %v483 = vmax.f32 %v296, 0.0
    %v484 = vmax.f32 %v409, 0.0
    %v485 = vmax.f32 %v299, 0.0
    %v486 = vmax.f32 %v412, 0.0
    %v487 = vmax.f32 %v302, 0.0
    %v488 = vmax.f32 %v415, 0.0
    %v489 = vmax.f32 %v305, 0.0
    %v490 = vmax.f32 %v418, 0.0
    %v491 = vmax.f32 %v308, 0.0
    %v492 = vmax.f32 %v421, 0.0
    %v493 = vmax.f32 %v311, 0.0
    %v494 = vmax.f32 %v424, 0.0
    %v495 = vmax.f32 %v314, 0.0
    %v496 = vmax.f32 %v427, 0.0
    %v497 = vmax.f32 %v317, 0.0
    %v498 = vmax.f32 %v430, 0.0
    %v499 = vmax.f32 %v320, 0.0
    %v500 = vmax.f32 %v433, 0.0
    %v501 = vmax.f32 %v323, 0.0
    %v502 = vmax.f32 %v436, 0.0
    %v503 = vmax.f32 %v326, 0.0
    %v504 = vmax.f32 %v439, 0.0
    %v505 = vld [vmem:[%s3] sm:$0xff]
    %v506 = vld [vmem:[%s3 + $0x8] sm:$0xff]
    %v507 = vld [vmem:[%s3 + $0x10] sm:$0xff]
    %v508 = vld [vmem:[%s3 + $0x18] sm:$0xff]
    %v509 = vld [vmem:[%s3 + $0x20] sm:$0xff]
    %v510 = vld [vmem:[%s3 + $0x28] sm:$0xff]
    %v511 = vld [vmem:[%s3 + $0x30] sm:$0xff]
    %v512 = vld [vmem:[%s3 + $0x38] sm:$0xff]
    %v513 = vld [vmem:[%s3 + $0x40] sm:$0xff]
    %v514 = vld [vmem:[%s3 + $0x48] sm:$0xff]
    %v515 = vld [vmem:[%s3 + $0x50] sm:$0xff]
    %v516 = vld [vmem:[%s3 + $0x58] sm:$0xff]
    %v517 = vld [vmem:[%s3 + $0x60] sm:$0xff]
    %v518 = vld [vmem:[%s3 + $0x68] sm:$0xff]
    %v519 = vld [vmem:[%s3 + $0x70] sm:$0xff]
    %v520 = vld [vmem:[%s3 + $0x78] sm:$0xff]
    %v521 = vld [vmem:[%s3 + $0x80] sm:$0xff]
    %v522 = vld [vmem:[%s3 + $0x88] sm:$0xff]
    %v523 = vld [vmem:[%s3 + $0x90] sm:$0xff]
    %v524 = vld [vmem:[%s3 + $0x98] sm:$0xff]
    %v525 = vld [vmem:[%s3 + $0xa0] sm:$0xff]
    %v526 = vld [vmem:[%s3 + $0xa8] sm:$0xff]
    %v527 = vld [vmem:[%s3 + $0xb0] sm:$0xff]
    %v528 = vld [vmem:[%s3 + $0xb8] sm:$0xff]
    %v529 = vld [vmem:[%s3 + $0xc0] sm:$0xff]
    %v530 = vld [vmem:[%s3 + $0xc8] sm:$0xff]
    %v531 = vld [vmem:[%s3 + $0xd0] sm:$0xff]
    %v532 = vld [vmem:[%s3 + $0xd8] sm:$0xff]
    %v533 = vld [vmem:[%s3 + $0xe0] sm:$0xff]
    %v534 = vld [vmem:[%s3 + $0xe8] sm:$0xff]
    %v535 = vld [vmem:[%s3 + $0xf0] sm:$0xff]
    %v536 = vld [vmem:[%s3 + $0xf8] sm:$0xff]
    %v537 = vld [vmem:[%s4] sm:$0x1]
    %v539 = vperm.slane %v537, 0
    %541 = vmatpush.msra.mxu0 %v520
    %542 = vmatpush.msra.mxu0 %v519
    %543 = vmatpush.msra.mxu0 %v518
    %544 = vmatpush.msra.mxu0 %v517
    %545 = vmatpush.msra.mxu0 %v516
    %546 = vmatpush.msra.mxu0 %v515
    %547 = vmatpush.msra.mxu0 %v514
    %548 = vmatpush.msra.mxu0 %v513
    %549 = vmatpush.msra.mxu0 %v512
    %550 = vmatpush.msra.mxu0 %v511
    %551 = vmatpush.msra.mxu0 %v510
    %552 = vmatpush.msra.mxu0 %v509
    %553 = vmatpush.msra.mxu0 %v508
    %554 = vmatpush.msra.mxu0 %v507
    %555 = vmatpush.msra.mxu0 %v506
    %556 = vmatpush.msra.mxu0 %v505
    %557 = vmatmul.f32.gmra.mxu0 %v441
    %v558 = vpop.f32.mrf.mxu0
    %v559 = vadd.f32 %v539, %v558
    %560 = vmatmul.f32.gmra.mxu0 %v443
    %v561 = vpop.f32.mrf.mxu0
    %v562 = vadd.f32 %v539, %v561
    %563 = vmatmul.f32.gmra.mxu0 %v445
    %v564 = vpop.f32.mrf.mxu0
    %v565 = vadd.f32 %v539, %v564
    %566 = vmatmul.f32.gmra.mxu0 %v447
    %v567 = vpop.f32.mrf.mxu0
    %v568 = vadd.f32 %v539, %v567
    %569 = vmatmul.f32.gmra.mxu0 %v449
    %v570 = vpop.f32.mrf.mxu0
    %v571 = vadd.f32 %v539, %v570
    %572 = vmatmul.f32.gmra.mxu0 %v451
    %v573 = vpop.f32.mrf.mxu0
    %v574 = vadd.f32 %v539, %v573
    %575 = vmatmul.f32.gmra.mxu0 %v453
    %v576 = vpop.f32.mrf.mxu0
    %v577 = vadd.f32 %v539, %v576
    %578 = vmatmul.f32.gmra.mxu0 %v455
    %v579 = vpop.f32.mrf.mxu0
    %v580 = vadd.f32 %v539, %v579
    %581 = vmatmul.f32.gmra.mxu0 %v457
    %v582 = vpop.f32.mrf.mxu0
    %v583 = vadd.f32 %v539, %v582
    %584 = vmatmul.f32.gmra.mxu0 %v459
    %v585 = vpop.f32.mrf.mxu0
    %v586 = vadd.f32 %v539, %v585
    %587 = vmatmul.f32.gmra.mxu0 %v461
    %v588 = vpop.f32.mrf.mxu0
    %v589 = vadd.f32 %v539, %v588
    %590 = vmatmul.f32.gmra.mxu0 %v463
    %v591 = vpop.f32.mrf.mxu0
    %v592 = vadd.f32 %v539, %v591
    %593 = vmatmul.f32.gmra.mxu0 %v465
    %v594 = vpop.f32.mrf.mxu0
    %v595 = vadd.f32 %v539, %v594
    %596 = vmatmul.f32.gmra.mxu0 %v467
    %v597 = vpop.f32.mrf.mxu0
    %v598 = vadd.f32 %v539, %v597
    %599 = vmatmul.f32.gmra.mxu0 %v469
    %v600 = vpop.f32.mrf.mxu0
    %v601 = vadd.f32 %v539, %v600
    %602 = vmatmul.f32.gmra.mxu0 %v471
    %v603 = vpop.f32.mrf.mxu0
    %v604 = vadd.f32 %v539, %v603
    %605 = vmatmul.f32.gmra.mxu0 %v473
    %v606 = vpop.f32.mrf.mxu0
    %v607 = vadd.f32 %v539, %v606
    %608 = vmatmul.f32.gmra.mxu0 %v475
    %v609 = vpop.f32.mrf.mxu0
    %v610 = vadd.f32 %v539, %v609
    %611 = vmatmul.f32.gmra.mxu0 %v477
    %v612 = vpop.f32.mrf.mxu0
    %v613 = vadd.f32 %v539, %v612
    %614 = vmatmul.f32.gmra.mxu0 %v479
    %v615 = vpop.f32.mrf.mxu0
    %v616 = vadd.f32 %v539, %v615
    %617 = vmatmul.f32.gmra.mxu0 %v481
    %v618 = vpop.f32.mrf.mxu0
    %v619 = vadd.f32 %v539, %v618
    %620 = vmatmul.f32.gmra.mxu0 %v483
    %v621 = vpop.f32.mrf.mxu0
    %v622 = vadd.f32 %v539, %v621
    %623 = vmatmul.f32.gmra.mxu0 %v485
    %v624 = vpop.f32.mrf.mxu0
    %v625 = vadd.f32 %v539, %v624
    %626 = vmatmul.f32.gmra.mxu0 %v487
    %v627 = vpop.f32.mrf.mxu0
    %v628 = vadd.f32 %v539, %v627
    %629 = vmatmul.f32.gmra.mxu0 %v489
    %v630 = vpop.f32.mrf.mxu0
    %v631 = vadd.f32 %v539, %v630
    %632 = vmatmul.f32.gmra.mxu0 %v491
    %v633 = vpop.f32.mrf.mxu0
    %v634 = vadd.f32 %v539, %v633
    %635 = vmatmul.f32.gmra.mxu0 %v493
    %v636 = vpop.f32.mrf.mxu0
    %v637 = vadd.f32 %v539, %v636
    %638 = vmatmul.f32.gmra.mxu0 %v495
    %v639 = vpop.f32.mrf.mxu0
    %v640 = vadd.f32 %v539, %v639
    %641 = vmatmul.f32.gmra.mxu0 %v497
    %v642 = vpop.f32.mrf.mxu0
    %v643 = vadd.f32 %v539, %v642
    %644 = vmatmul.f32.gmra.mxu0 %v499
    %v645 = vpop.f32.mrf.mxu0
    %v646 = vadd.f32 %v539, %v645
    %647 = vmatmul.f32.gmra.mxu0 %v501
    %v648 = vpop.f32.mrf.mxu0
    %v649 = vadd.f32 %v539, %v648
    %650 = vmatmul.f32.gmra.mxu0 %v503
    %v651 = vpop.f32.mrf.mxu0
    %v652 = vadd.f32 %v539, %v651
    %653 = vdwg.mxu0
    %654 = vmatpush.msra.mxu0 %v536
    %655 = vmatpush.msra.mxu0 %v535
    %656 = vmatpush.msra.mxu0 %v534
    %657 = vmatpush.msra.mxu0 %v533
    %658 = vmatpush.msra.mxu0 %v532
    %659 = vmatpush.msra.mxu0 %v531
    %660 = vmatpush.msra.mxu0 %v530
    %661 = vmatpush.msra.mxu0 %v529
    %662 = vmatpush.msra.mxu0 %v528
    %663 = vmatpush.msra.mxu0 %v527
    %664 = vmatpush.msra.mxu0 %v526
    %665 = vmatpush.msra.mxu0 %v525
    %666 = vmatpush.msra.mxu0 %v524
    %667 = vmatpush.msra.mxu0 %v523
    %668 = vmatpush.msra.mxu0 %v522
    %669 = vmatpush.msra.mxu0 %v521
    %670 = vmatmul.f32.gmra.mxu0 %v442
    %v671 = vpop.f32.mrf.mxu0
    %v672 = vadd.f32 %v559, %v671
    %673 = vmatmul.f32.gmra.mxu0 %v444
    %v674 = vpop.f32.mrf.mxu0
    %v675 = vadd.f32 %v562, %v674
    %676 = vmatmul.f32.gmra.mxu0 %v446
    %v677 = vpop.f32.mrf.mxu0
    %v678 = vadd.f32 %v565, %v677
    %679 = vmatmul.f32.gmra.mxu0 %v448
    %v680 = vpop.f32.mrf.mxu0
    %v681 = vadd.f32 %v568, %v680
    %682 = vmatmul.f32.gmra.mxu0 %v450
    %v683 = vpop.f32.mrf.mxu0
    %v684 = vadd.f32 %v571, %v683
    %685 = vmatmul.f32.gmra.mxu0 %v452
    %v686 = vpop.f32.mrf.mxu0
    %v687 = vadd.f32 %v574, %v686
    %688 = vmatmul.f32.gmra.mxu0 %v454
    %v689 = vpop.f32.mrf.mxu0
    %v690 = vadd.f32 %v577, %v689
    %691 = vmatmul.f32.gmra.mxu0 %v456
    %v692 = vpop.f32.mrf.mxu0
    %v693 = vadd.f32 %v580, %v692
    %694 = vmatmul.f32.gmra.mxu0 %v458
    %v695 = vpop.f32.mrf.mxu0
    %v696 = vadd.f32 %v583, %v695
    %697 = vmatmul.f32.gmra.mxu0 %v460
    %v698 = vpop.f32.mrf.mxu0
    %v699 = vadd.f32 %v586, %v698
    %700 = vmatmul.f32.gmra.mxu0 %v462
    %v701 = vpop.f32.mrf.mxu0
    %v702 = vadd.f32 %v589, %v701
    %703 = vmatmul.f32.gmra.mxu0 %v464
    %v704 = vpop.f32.mrf.mxu0
    %v705 = vadd.f32 %v592, %v704
    %706 = vmatmul.f32.gmra.mxu0 %v466
    %v707 = vpop.f32.mrf.mxu0
    %v708 = vadd.f32 %v595, %v707
    %709 = vmatmul.f32.gmra.mxu0 %v468
    %v710 = vpop.f32.mrf.mxu0
    %v711 = vadd.f32 %v598, %v710
    %712 = vmatmul.f32.gmra.mxu0 %v470
    %v713 = vpop.f32.mrf.mxu0
    %v714 = vadd.f32 %v601, %v713
    %715 = vmatmul.f32.gmra.mxu0 %v472
    %v716 = vpop.f32.mrf.mxu0
    %v717 = vadd.f32 %v604, %v716
    %718 = vmatmul.f32.gmra.mxu0 %v474
    %v719 = vpop.f32.mrf.mxu0
    %v720 = vadd.f32 %v607, %v719
    %721 = vmatmul.f32.gmra.mxu0 %v476
    %v722 = vpop.f32.mrf.mxu0
    %v723 = vadd.f32 %v610, %v722
    %724 = vmatmul.f32.gmra.mxu0 %v478
    %v725 = vpop.f32.mrf.mxu0
    %v726 = vadd.f32 %v613, %v725
    %727 = vmatmul.f32.gmra.mxu0 %v480
    %v728 = vpop.f32.mrf.mxu0
    %v729 = vadd.f32 %v616, %v728
    %730 = vmatmul.f32.gmra.mxu0 %v482
    %v731 = vpop.f32.mrf.mxu0
    %v732 = vadd.f32 %v619, %v731
    %733 = vmatmul.f32.gmra.mxu0 %v484
    %v734 = vpop.f32.mrf.mxu0
    %v735 = vadd.f32 %v622, %v734
    %736 = vmatmul.f32.gmra.mxu0 %v486
    %v737 = vpop.f32.mrf.mxu0
    %v738 = vadd.f32 %v625, %v737
    %739 = vmatmul.f32.gmra.mxu0 %v488
    %v740 = vpop.f32.mrf.mxu0
    %v741 = vadd.f32 %v628, %v740
    %742 = vmatmul.f32.gmra.mxu0 %v490
    %v743 = vpop.f32.mrf.mxu0
    %v744 = vadd.f32 %v631, %v743
    %745 = vmatmul.f32.gmra.mxu0 %v492
    %v746 = vpop.f32.mrf.mxu0
    %v747 = vadd.f32 %v634, %v746
    %748 = vmatmul.f32.gmra.mxu0 %v494
    %v749 = vpop.f32.mrf.mxu0
    %v750 = vadd.f32 %v637, %v749
    %751 = vmatmul.f32.gmra.mxu0 %v496
    %v752 = vpop.f32.mrf.mxu0
    %v753 = vadd.f32 %v640, %v752
    %754 = vmatmul.f32.gmra.mxu0 %v498
    %v755 = vpop.f32.mrf.mxu0
    %v756 = vadd.f32 %v643, %v755
    %757 = vmatmul.f32.gmra.mxu0 %v500
    %v758 = vpop.f32.mrf.mxu0
    %v759 = vadd.f32 %v646, %v758
    %760 = vmatmul.f32.gmra.mxu0 %v502
    %v761 = vpop.f32.mrf.mxu0
    %v762 = vadd.f32 %v649, %v761
    %763 = vmatmul.f32.gmra.mxu0 %v504
    %v764 = vpop.f32.mrf.mxu0
    %v765 = vadd.f32 %v652, %v764
    %766 = vdwg.mxu0
    %v767 = vmax.f32 %v672, 0.0
    %v768 = vmax.f32 %v675, 0.0
    %v769 = vmax.f32 %v678, 0.0
    %v770 = vmax.f32 %v681, 0.0
    %v771 = vmax.f32 %v684, 0.0
    %v772 = vmax.f32 %v687, 0.0
    %v773 = vmax.f32 %v690, 0.0
    %v774 = vmax.f32 %v693, 0.0
    %v775 = vmax.f32 %v696, 0.0
    %v776 = vmax.f32 %v699, 0.0
    %v777 = vmax.f32 %v702, 0.0
    %v778 = vmax.f32 %v705, 0.0
    %v779 = vmax.f32 %v708, 0.0
    %v780 = vmax.f32 %v711, 0.0
    %v781 = vmax.f32 %v714, 0.0
    %v782 = vmax.f32 %v717, 0.0
    %v783 = vmax.f32 %v720, 0.0
    %v784 = vmax.f32 %v723, 0.0
    %v785 = vmax.f32 %v726, 0.0
    %v786 = vmax.f32 %v729, 0.0
    %v787 = vmax.f32 %v732, 0.0
    %v788 = vmax.f32 %v735, 0.0
    %v789 = vmax.f32 %v738, 0.0
    %v790 = vmax.f32 %v741, 0.0
    %v791 = vmax.f32 %v744, 0.0
    %v792 = vmax.f32 %v747, 0.0
    %v793 = vmax.f32 %v750, 0.0
    %v794 = vmax.f32 %v753, 0.0
    %v795 = vmax.f32 %v756, 0.0
    %v796 = vmax.f32 %v759, 0.0
    %v797 = vmax.f32 %v762, 0.0
    %v798 = vmax.f32 %v765, 0.0
    %v799 = vld [vmem:[#allocation2] sm:$0xff]
    %v800 = vld [vmem:[#allocation2 + $0x8] sm:$0xff]
    %v801 = vld [vmem:[#allocation2 + $0x10] sm:$0xff]
    %v802 = vld [vmem:[#allocation2 + $0x18] sm:$0xff]
    %v803 = vld [vmem:[#allocation2 + $0x20] sm:$0xff]
    %v804 = vld [vmem:[#allocation2 + $0x28] sm:$0xff]
    %v805 = vld [vmem:[#allocation2 + $0x30] sm:$0xff]
    %v806 = vld [vmem:[#allocation2 + $0x38] sm:$0xff]
    %v807 = vld [vmem:[#allocation2 + $0x40] sm:$0xff]
    %v808 = vld [vmem:[#allocation2 + $0x48] sm:$0xff]
    %v809 = vld [vmem:[#allocation2 + $0x50] sm:$0xff]
    %v810 = vld [vmem:[#allocation2 + $0x58] sm:$0xff]
    %v811 = vld [vmem:[#allocation2 + $0x60] sm:$0xff]
    %v812 = vld [vmem:[#allocation2 + $0x68] sm:$0xff]
    %v813 = vld [vmem:[#allocation2 + $0x70] sm:$0xff]
    %v814 = vld [vmem:[#allocation2 + $0x78] sm:$0xff]
    %v815 = vld [vmem:[%s6] sm:$0x1]
    %v817 = vperm.slane %v815, 0
    %819 = vmatpush.msra.mxu0 %v814
    %820 = vmatpush.msra.mxu0 %v813
    %821 = vmatpush.msra.mxu0 %v812
    %822 = vmatpush.msra.mxu0 %v811
    %823 = vmatpush.msra.mxu0 %v810
    %824 = vmatpush.msra.mxu0 %v809
    %825 = vmatpush.msra.mxu0 %v808
    %826 = vmatpush.msra.mxu0 %v807
    %827 = vmatpush.msra.mxu0 %v806
    %828 = vmatpush.msra.mxu0 %v805
    %829 = vmatpush.msra.mxu0 %v804
    %830 = vmatpush.msra.mxu0 %v803
    %831 = vmatpush.msra.mxu0 %v802
    %832 = vmatpush.msra.mxu0 %v801
    %833 = vmatpush.msra.mxu0 %v800
    %834 = vmatpush.msra.mxu0 %v799
    %835 = vmatmul.f32.gmra.mxu0 %v767
    %v836 = vpop.f32.mrf.mxu0
    %v837 = vadd.f32 %v817, %v836
    %838 = vmatmul.f32.gmra.mxu0 %v768
    %v839 = vpop.f32.mrf.mxu0
    %v840 = vadd.f32 %v817, %v839
    %841 = vmatmul.f32.gmra.mxu0 %v769
    %v842 = vpop.f32.mrf.mxu0
    %v843 = vadd.f32 %v817, %v842
    %844 = vmatmul.f32.gmra.mxu0 %v770
    %v845 = vpop.f32.mrf.mxu0
    %v846 = vadd.f32 %v817, %v845
    %847 = vmatmul.f32.gmra.mxu0 %v771
    %v848 = vpop.f32.mrf.mxu0
    %v849 = vadd.f32 %v817, %v848
    %850 = vmatmul.f32.gmra.mxu0 %v772
    %v851 = vpop.f32.mrf.mxu0
    %v852 = vadd.f32 %v817, %v851
    %853 = vmatmul.f32.gmra.mxu0 %v773
    %v854 = vpop.f32.mrf.mxu0
    %v855 = vadd.f32 %v817, %v854
    %856 = vmatmul.f32.gmra.mxu0 %v774
    %v857 = vpop.f32.mrf.mxu0
    %v858 = vadd.f32 %v817, %v857
    %859 = vmatmul.f32.gmra.mxu0 %v775
    %v860 = vpop.f32.mrf.mxu0
    %v861 = vadd.f32 %v817, %v860
    %862 = vmatmul.f32.gmra.mxu0 %v776
    %v863 = vpop.f32.mrf.mxu0
    %v864 = vadd.f32 %v817, %v863
    %865 = vmatmul.f32.gmra.mxu0 %v777
    %v866 = vpop.f32.mrf.mxu0
    %v867 = vadd.f32 %v817, %v866
    %868 = vmatmul.f32.gmra.mxu0 %v778
    %v869 = vpop.f32.mrf.mxu0
    %v870 = vadd.f32 %v817, %v869
    %871 = vmatmul.f32.gmra.mxu0 %v779
    %v872 = vpop.f32.mrf.mxu0
    %v873 = vadd.f32 %v817, %v872
    %874 = vmatmul.f32.gmra.mxu0 %v780
    %v875 = vpop.f32.mrf.mxu0
    %v876 = vadd.f32 %v817, %v875
    %877 = vmatmul.f32.gmra.mxu0 %v781
    %v878 = vpop.f32.mrf.mxu0
    %v879 = vadd.f32 %v817, %v878
    %880 = vmatmul.f32.gmra.mxu0 %v782
    %v881 = vpop.f32.mrf.mxu0
    %v882 = vadd.f32 %v817, %v881
    %883 = vmatmul.f32.gmra.mxu0 %v783
    %v884 = vpop.f32.mrf.mxu0
    %v885 = vadd.f32 %v817, %v884
    %886 = vmatmul.f32.gmra.mxu0 %v784
    %v887 = vpop.f32.mrf.mxu0
    %v888 = vadd.f32 %v817, %v887
    %889 = vmatmul.f32.gmra.mxu0 %v785
    %v890 = vpop.f32.mrf.mxu0
    %v891 = vadd.f32 %v817, %v890
    %892 = vmatmul.f32.gmra.mxu0 %v786
    %v893 = vpop.f32.mrf.mxu0
    %v894 = vadd.f32 %v817, %v893
    %895 = vmatmul.f32.gmra.mxu0 %v787
    %v896 = vpop.f32.mrf.mxu0
    %v897 = vadd.f32 %v817, %v896
    %898 = vmatmul.f32.gmra.mxu0 %v788
    %v899 = vpop.f32.mrf.mxu0
    %v900 = vadd.f32 %v817, %v899
    %901 = vmatmul.f32.gmra.mxu0 %v789
    %v902 = vpop.f32.mrf.mxu0
    %v903 = vadd.f32 %v817, %v902
    %904 = vmatmul.f32.gmra.mxu0 %v790
    %v905 = vpop.f32.mrf.mxu0
    %v906 = vadd.f32 %v817, %v905
    %907 = vmatmul.f32.gmra.mxu0 %v791
    %v908 = vpop.f32.mrf.mxu0
    %v909 = vadd.f32 %v817, %v908
    %910 = vmatmul.f32.gmra.mxu0 %v792
    %v911 = vpop.f32.mrf.mxu0
    %v912 = vadd.f32 %v817, %v911
    %913 = vmatmul.f32.gmra.mxu0 %v793
    %v914 = vpop.f32.mrf.mxu0
    %v915 = vadd.f32 %v817, %v914
    %916 = vmatmul.f32.gmra.mxu0 %v794
    %v917 = vpop.f32.mrf.mxu0
    %v918 = vadd.f32 %v817, %v917
    %919 = vmatmul.f32.gmra.mxu0 %v795
    %v920 = vpop.f32.mrf.mxu0
    %v921 = vadd.f32 %v817, %v920
    %922 = vmatmul.f32.gmra.mxu0 %v796
    %v923 = vpop.f32.mrf.mxu0
    %v924 = vadd.f32 %v817, %v923
    %925 = vmatmul.f32.gmra.mxu0 %v797
    %v926 = vpop.f32.mrf.mxu0
    %v927 = vadd.f32 %v817, %v926
    %928 = vmatmul.f32.gmra.mxu0 %v798
    %v929 = vpop.f32.mrf.mxu0
    %v930 = vadd.f32 %v817, %v929
    %931 = vdwg.mxu0
    %v932 = vmax.f32 %v837, 0.0
    %v933 = vmax.f32 %v840, 0.0
    %v934 = vmax.f32 %v843, 0.0
    %v935 = vmax.f32 %v846, 0.0
    %v936 = vmax.f32 %v849, 0.0
    %v937 = vmax.f32 %v852, 0.0
    %v938 = vmax.f32 %v855, 0.0
    %v939 = vmax.f32 %v858, 0.0
    %v940 = vmax.f32 %v861, 0.0
    %v941 = vmax.f32 %v864, 0.0
    %v942 = vmax.f32 %v867, 0.0
    %v943 = vmax.f32 %v870, 0.0
    %v944 = vmax.f32 %v873, 0.0
    %v945 = vmax.f32 %v876, 0.0
    %v946 = vmax.f32 %v879, 0.0
    %v947 = vmax.f32 %v882, 0.0
    %v948 = vmax.f32 %v885, 0.0
    %v949 = vmax.f32 %v888, 0.0
    %v950 = vmax.f32 %v891, 0.0
    %v951 = vmax.f32 %v894, 0.0
    %v952 = vmax.f32 %v897, 0.0
    %v953 = vmax.f32 %v900, 0.0
    %v954 = vmax.f32 %v903, 0.0
    %v955 = vmax.f32 %v906, 0.0
    %v956 = vmax.f32 %v909, 0.0
    %v957 = vmax.f32 %v912, 0.0
    %v958 = vmax.f32 %v915, 0.0
    %v959 = vmax.f32 %v918, 0.0
    %v960 = vmax.f32 %v921, 0.0
    %v961 = vmax.f32 %v924, 0.0
    %v962 = vmax.f32 %v927, 0.0
    %v963 = vmax.f32 %v930, 0.0
    %v964 = vld [vmem:[#allocation4] sm:$0xff]
    %v965 = vld [vmem:[#allocation4 + $0x8] sm:$0xff]
    %v966 = vld [vmem:[#allocation4 + $0x10] sm:$0xff]
    %v967 = vld [vmem:[#allocation4 + $0x18] sm:$0xff]
    %v968 = vld [vmem:[#allocation4 + $0x20] sm:$0xff]
    %v969 = vld [vmem:[#allocation4 + $0x28] sm:$0xff]
    %v970 = vld [vmem:[#allocation4 + $0x30] sm:$0xff]
    %v971 = vld [vmem:[#allocation4 + $0x38] sm:$0xff]
    %v972 = vld [vmem:[#allocation4 + $0x40] sm:$0xff]
    %v973 = vld [vmem:[#allocation4 + $0x48] sm:$0xff]
    %v974 = vld [vmem:[#allocation4 + $0x50] sm:$0xff]
    %v975 = vld [vmem:[#allocation4 + $0x58] sm:$0xff]
    %v976 = vld [vmem:[#allocation4 + $0x60] sm:$0xff]
    %v977 = vld [vmem:[#allocation4 + $0x68] sm:$0xff]
    %v978 = vld [vmem:[#allocation4 + $0x70] sm:$0xff]
    %v979 = vld [vmem:[#allocation4 + $0x78] sm:$0xff]
    %v980 = vld [vmem:[%s8] sm:$0x1]
    %v982 = vperm.slane %v980, 0
    %984 = vmatpush.msra.mxu0 %v979
    %985 = vmatpush.msra.mxu0 %v978
    %986 = vmatpush.msra.mxu0 %v977
    %987 = vmatpush.msra.mxu0 %v976
    %988 = vmatpush.msra.mxu0 %v975
    %989 = vmatpush.msra.mxu0 %v974
    %990 = vmatpush.msra.mxu0 %v973
    %991 = vmatpush.msra.mxu0 %v972
    %992 = vmatpush.msra.mxu0 %v971
    %993 = vmatpush.msra.mxu0 %v970
    %994 = vmatpush.msra.mxu0 %v969
    %995 = vmatpush.msra.mxu0 %v968
    %996 = vmatpush.msra.mxu0 %v967
    %997 = vmatpush.msra.mxu0 %v966
    %998 = vmatpush.msra.mxu0 %v965
    %999 = vmatpush.msra.mxu0 %v964
    %1000 = vmatmul.f32.gmra.mxu0 %v932
    %v1001 = vpop.f32.mrf.mxu0
    %v1002 = vadd.f32 %v982, %v1001
    %1003 = vmatmul.f32.gmra.mxu0 %v933
    %v1004 = vpop.f32.mrf.mxu0
    %v1005 = vadd.f32 %v982, %v1004
    %1006 = vmatmul.f32.gmra.mxu0 %v934
    %v1007 = vpop.f32.mrf.mxu0
    %v1008 = vadd.f32 %v982, %v1007
    %1009 = vmatmul.f32.gmra.mxu0 %v935
    %v1010 = vpop.f32.mrf.mxu0
    %v1011 = vadd.f32 %v982, %v1010
    %1012 = vmatmul.f32.gmra.mxu0 %v936
    %v1013 = vpop.f32.mrf.mxu0
    %v1014 = vadd.f32 %v982, %v1013
    %1015 = vmatmul.f32.gmra.mxu0 %v937
    %v1016 = vpop.f32.mrf.mxu0
    %v1017 = vadd.f32 %v982, %v1016
    %1018 = vmatmul.f32.gmra.mxu0 %v938
    %v1019 = vpop.f32.mrf.mxu0
    %v1020 = vadd.f32 %v982, %v1019
    %1021 = vmatmul.f32.gmra.mxu0 %v939
    %v1022 = vpop.f32.mrf.mxu0
    %v1023 = vadd.f32 %v982, %v1022
    %1024 = vmatmul.f32.gmra.mxu0 %v940
    %v1025 = vpop.f32.mrf.mxu0
    %v1026 = vadd.f32 %v982, %v1025
    %1027 = vmatmul.f32.gmra.mxu0 %v941
    %v1028 = vpop.f32.mrf.mxu0
    %v1029 = vadd.f32 %v982, %v1028
    %1030 = vmatmul.f32.gmra.mxu0 %v942
    %v1031 = vpop.f32.mrf.mxu0
    %v1032 = vadd.f32 %v982, %v1031
    %1033 = vmatmul.f32.gmra.mxu0 %v943
    %v1034 = vpop.f32.mrf.mxu0
    %v1035 = vadd.f32 %v982, %v1034
    %1036 = vmatmul.f32.gmra.mxu0 %v944
    %v1037 = vpop.f32.mrf.mxu0
    %v1038 = vadd.f32 %v982, %v1037
    %1039 = vmatmul.f32.gmra.mxu0 %v945
    %v1040 = vpop.f32.mrf.mxu0
    %v1041 = vadd.f32 %v982, %v1040
    %1042 = vmatmul.f32.gmra.mxu0 %v946
    %v1043 = vpop.f32.mrf.mxu0
    %v1044 = vadd.f32 %v982, %v1043
    %1045 = vmatmul.f32.gmra.mxu0 %v947
    %v1046 = vpop.f32.mrf.mxu0
    %v1047 = vadd.f32 %v982, %v1046
    %1048 = vmatmul.f32.gmra.mxu0 %v948
    %v1049 = vpop.f32.mrf.mxu0
    %v1050 = vadd.f32 %v982, %v1049
    %1051 = vmatmul.f32.gmra.mxu0 %v949
    %v1052 = vpop.f32.mrf.mxu0
    %v1053 = vadd.f32 %v982, %v1052
    %1054 = vmatmul.f32.gmra.mxu0 %v950
    %v1055 = vpop.f32.mrf.mxu0
    %v1056 = vadd.f32 %v982, %v1055
    %1057 = vmatmul.f32.gmra.mxu0 %v951
    %v1058 = vpop.f32.mrf.mxu0
    %v1059 = vadd.f32 %v982, %v1058
    %1060 = vmatmul.f32.gmra.mxu0 %v952
    %v1061 = vpop.f32.mrf.mxu0
    %v1062 = vadd.f32 %v982, %v1061
    %1063 = vmatmul.f32.gmra.mxu0 %v953
    %v1064 = vpop.f32.mrf.mxu0
    %v1065 = vadd.f32 %v982, %v1064
    %1066 = vmatmul.f32.gmra.mxu0 %v954
    %v1067 = vpop.f32.mrf.mxu0
    %v1068 = vadd.f32 %v982, %v1067
    %1069 = vmatmul.f32.gmra.mxu0 %v955
    %v1070 = vpop.f32.mrf.mxu0
    %v1071 = vadd.f32 %v982, %v1070
    %1072 = vmatmul.f32.gmra.mxu0 %v956
    %v1073 = vpop.f32.mrf.mxu0
    %v1074 = vadd.f32 %v982, %v1073
    %1075 = vmatmul.f32.gmra.mxu0 %v957
    %v1076 = vpop.f32.mrf.mxu0
    %v1077 = vadd.f32 %v982, %v1076
    %1078 = vmatmul.f32.gmra.mxu0 %v958
    %v1079 = vpop.f32.mrf.mxu0
    %v1080 = vadd.f32 %v982, %v1079
    %1081 = vmatmul.f32.gmra.mxu0 %v959
    %v1082 = vpop.f32.mrf.mxu0
    %v1083 = vadd.f32 %v982, %v1082
    %1084 = vmatmul.f32.gmra.mxu0 %v960
    %v1085 = vpop.f32.mrf.mxu0
    %v1086 = vadd.f32 %v982, %v1085
    %1087 = vmatmul.f32.gmra.mxu0 %v961
    %v1088 = vpop.f32.mrf.mxu0
    %v1089 = vadd.f32 %v982, %v1088
    %1090 = vmatmul.f32.gmra.mxu0 %v962
    %v1091 = vpop.f32.mrf.mxu0
    %v1092 = vadd.f32 %v982, %v1091
    %1093 = vmatmul.f32.gmra.mxu0 %v963
    %v1094 = vpop.f32.mrf.mxu0
    %v1095 = vadd.f32 %v982, %v1094
    %1096 = vdwg.mxu0
    %1097 = vst [vmem:[%s9] sm:$0xff] %v1002
    %1098 = vst [vmem:[%s9 + $0x8] sm:$0xff] %v1005
    %1099 = vst [vmem:[%s9 + $0x10] sm:$0xff] %v1008
    %1100 = vst [vmem:[%s9 + $0x18] sm:$0xff] %v1011
    %1101 = vst [vmem:[%s9 + $0x20] sm:$0xff] %v1014
    %1102 = vst [vmem:[%s9 + $0x28] sm:$0xff] %v1017
    %1103 = vst [vmem:[%s9 + $0x30] sm:$0xff] %v1020
    %1104 = vst [vmem:[%s9 + $0x38] sm:$0xff] %v1023
    %1105 = vst [vmem:[%s9 + $0x40] sm:$0xff] %v1026
    %1106 = vst [vmem:[%s9 + $0x48] sm:$0xff] %v1029
    %1107 = vst [vmem:[%s9 + $0x50] sm:$0xff] %v1032
    %1108 = vst [vmem:[%s9 + $0x58] sm:$0xff] %v1035
    %1109 = vst [vmem:[%s9 + $0x60] sm:$0xff] %v1038
    %1110 = vst [vmem:[%s9 + $0x68] sm:$0xff] %v1041
    %1111 = vst [vmem:[%s9 + $0x70] sm:$0xff] %v1044
    %1112 = vst [vmem:[%s9 + $0x78] sm:$0xff] %v1047
    %1113 = vst [vmem:[%s9 + $0x80] sm:$0xff] %v1050
    %1114 = vst [vmem:[%s9 + $0x88] sm:$0xff] %v1053
    %1115 = vst [vmem:[%s9 + $0x90] sm:$0xff] %v1056
    %1116 = vst [vmem:[%s9 + $0x98] sm:$0xff] %v1059
    %1117 = vst [vmem:[%s9 + $0xa0] sm:$0xff] %v1062
    %1118 = vst [vmem:[%s9 + $0xa8] sm:$0xff] %v1065
    %1119 = vst [vmem:[%s9 + $0xb0] sm:$0xff] %v1068
    %1120 = vst [vmem:[%s9 + $0xb8] sm:$0xff] %v1071
    %1121 = vst [vmem:[%s9 + $0xc0] sm:$0xff] %v1074
    %1122 = vst [vmem:[%s9 + $0xc8] sm:$0xff] %v1077
    %1123 = vst [vmem:[%s9 + $0xd0] sm:$0xff] %v1080
    %1124 = vst [vmem:[%s9 + $0xd8] sm:$0xff] %v1083
    %1125 = vst [vmem:[%s9 + $0xe0] sm:$0xff] %v1086
    %1126 = vst [vmem:[%s9 + $0xe8] sm:$0xff] %v1089
    %1127 = vst [vmem:[%s9 + $0xf0] sm:$0xff] %v1092
    %1128 = vst [vmem:[%s9 + $0xf8] sm:$0xff] %v1095
    // Predicated region
    $region46: #{enhanced_mlp_forward.1} parent=1 // pred_check
      _
    $region47: #{enhanced_mlp_forward.1} parent=1 // pred_check_branch
      %1130 = sbr.rel (0) target = $region49
    $region48: #{enhanced_mlp_forward.1} parent=1 // pred_region
      _
    $region49: #{enhanced_mlp_forward.1} parent=1 // pred_fallthru
      _
    // Predicated region
    $region50: #{enhanced_mlp_forward.1} parent=1 // pred_check
      _
    $region51: #{enhanced_mlp_forward.1} parent=1 // pred_check_branch
      %1132 = sbr.rel (0) target = $region53
    $region52: #{enhanced_mlp_forward.1} parent=1 // pred_region
      _
    $region53: #{enhanced_mlp_forward.1} parent=1 // pred_fallthru
      _
    %1133 = vsyncpa [#allocation3], 1
    %1134 = vsyncpa [#allocation5], 1

</llo_original>
